<compile_context>
chip_gen: v5e
topology: v5e:2x2
jax: 0.10.0
libtpu: 0.0.40
codegen_flags: <defaults>
</compile_context>

<pallas_src>
import jax
import jax.numpy as jnp
from jax.experimental import pallas as pl
from jax.experimental.pallas import tpu as pltpu

_LANE = 128
BUFFER_LEN = 53


def _round_up(x, m):
    return ((x + m - 1) // m) * m


# --------------------------------------------------------------------------
# Pallas kernel: per-row (= per batch*channel) sum of squared differences,
# reduced over the tiled pixel axis into a resident (1, rows, 128) output block.
# grid = (n_chunks [parallel], tiles_per_chunk [arbitrary])
# --------------------------------------------------------------------------
def _rowsumsq_kernel(f_ref, t_ref, acc_ref):
    @pl.when(pl.program_id(1) == 0)
    def _():
        acc_ref[...] = jnp.zeros_like(acc_ref)

    d = f_ref[...] - t_ref[...]          # (rows, tile) f32
    dd = d * d

    # Defer the cross-lane reduction: fold the tile's lane-blocks into a
    # 128-wide accumulator with VALU adds only (XLU stays out of the loop).
    tile = dd.shape[1]
    part = dd[:, 0:_LANE]
    for j in range(1, tile // _LANE):
        part = part + dd[:, j * _LANE:(j + 1) * _LANE]

    acc_ref[0, :, :] += part


def _per_field_mse(field, target, *, max_tile_lanes=8192,
                   vmem_input_budget_bytes=16 * 1024 * 1024):
    """Per-channel mean squared error over (batch, spatial) via Pallas."""
    b, c, h, w = field.shape
    npix = h * w
    rows = b * c

    # Free reshapes (no transpose, no concat): rows on sublanes, pixels on lanes.
    x = field.reshape(rows, npix).astype(jnp.float32)
    t = target.reshape(rows, npix).astype(jnp.float32)

    # Lane-tile size: as large as the double-buffered-input VMEM budget allows,
    # capped so it also fits v7x's smaller VMEM.
    budget_lanes = max(_LANE, vmem_input_budget_bytes // (rows * 2 * 2 * 4))
    tile = min(max_tile_lanes, budget_lanes, _round_up(npix, _LANE))
    tile = max(_LANE, (tile // _LANE) * _LANE)

    total_tiles = -(-npix // tile)
    # Second TensorCore (v7x) via a leading "parallel" chunk axis.
    n_chunks = 2 if total_tiles >= 4 else 1
    npix_pad = _round_up(npix, n_chunks * tile)
    if npix_pad != npix:
        # Zero-pad both operands: the tail contributes exactly 0 to the sum.
        x = jnp.pad(x, ((0, 0), (0, npix_pad - npix)))
        t = jnp.pad(t, ((0, 0), (0, npix_pad - npix)))
    tiles_per_chunk = npix_pad // (n_chunks * tile)

    partial = pl.pallas_call(
        _rowsumsq_kernel,
        grid=(n_chunks, tiles_per_chunk),
        in_specs=[
            pl.BlockSpec((rows, tile),
                         lambda ci, i: (0, ci * tiles_per_chunk + i)),
            pl.BlockSpec((rows, tile),
                         lambda ci, i: (0, ci * tiles_per_chunk + i)),
        ],
        out_specs=pl.BlockSpec((1, rows, _LANE), lambda ci, i: (ci, 0, 0)),
        out_shape=jax.ShapeDtypeStruct((n_chunks, rows, _LANE), jnp.float32),
        compiler_params=pltpu.CompilerParams(
            dimension_semantics=("parallel", "arbitrary")),
    )(x, t)

    # Tiny epilogue in plain JAX: (n_chunks, rows, 128) -> per-field means.
    row_sums = jnp.sum(partial, axis=(0, 2))                 # (rows,)
    per_field = jnp.sum(row_sums.reshape(b, c), axis=0)      # (c,)
    return per_field / float(b * npix)


# --------------------------------------------------------------------------
# Forward pass of MultiHeadLossAutoTuneVariance (stateless: buffer passed in/out)
# --------------------------------------------------------------------------
def multi_head_loss_autotune_variance(head_fields, head_targets, lambdas,
                                      buffer, buffer_index,
                                      *, max_tile_lanes=8192):
    """Returns (total_loss, flat_head_losses, new_buffer, new_index, epsilons)."""
    assert len(head_fields) == len(head_targets)

    flat = jnp.concatenate([
        _per_field_mse(f, t, max_tile_lanes=max_tile_lanes)
        for f, t in zip(head_fields, head_targets)
    ])                                                       # (F,)
    n_fields = flat.shape[0]
    assert lambdas.shape[0] == n_fields == buffer.shape[0]

    # Rolling buffer update (torch: float64; here f32).
    new_index = (buffer_index + 1) % buffer.shape[1]
    new_buffer = buffer.at[:, new_index].set(flat)

    # Loss-variance epsilons (O(F*53) scalar work -> plain JAX, not a kernel).
    ncol = buffer.shape[1]
    eps = jnp.sqrt(jnp.mean(new_buffer ** 2, axis=1)
                   - jnp.sum(new_buffer, axis=1) ** 2 / float(ncol ** 2))
    eps = jnp.where(jnp.isnan(eps), 10.0, eps)
    eps = jnp.clip(eps, 0.01, 100.0)
    eps = eps * jnp.sum(1.0 / eps) / float(n_fields)

    total = jnp.sum(lambdas * flat / eps)
    return total, flat, new_buffer, new_index, eps


# --------------------------------------------------------------------------
# Plain-JAX reference (mirrors the PyTorch forward, MSE sub-losses)
# --------------------------------------------------------------------------
def _reference(head_fields, head_targets, lambdas, buffer, buffer_index):
    losses = []
    for f, t in zip(head_fields, head_targets):
        for ci in range(f.shape[1]):
            losses.append(jnp.mean((f[:, ci].astype(jnp.float32)
                                    - t[:, ci].astype(jnp.float32)) ** 2))
    flat = jnp.stack(losses)
    new_index = (buffer_index + 1) % buffer.shape[1]
    new_buffer = buffer.at[:, new_index].set(flat)
    ncol = buffer.shape[1]
    eps = jnp.sqrt(jnp.mean(new_buffer ** 2, axis=1)
                   - jnp.sum(new_buffer, axis=1) ** 2 / float(ncol ** 2))
    eps = jnp.where(jnp.isnan(eps), 10.0, eps)
    eps = jnp.clip(eps, 0.01, 100.0)
    eps = eps * jnp.sum(1.0 / eps) / float(flat.shape[0])
    total = jnp.sum(lambdas * flat / eps)
    return total, flat, new_buffer, new_index, eps


if __name__ == "__main__":
    key = jax.random.PRNGKey(0)
    B = 2
    # three heads: 3 fields @16x16, 2 fields @17x17 (padded-tail path),
    # 1 field @32x32 (multi-tile + two-chunk "parallel" path when tile=128)
    k1, k2, k3, k4, k5, k6 = jax.random.split(key, 6)
    head_fields = [
        jax.random.normal(k1, (B, 3, 16, 16), jnp.float32),
        jax.random.normal(k2, (B, 2, 17, 17), jnp.float32),
        jax.random.normal(k3, (B, 1, 32, 32), jnp.float32),
    ]
    head_targets = [
        jax.random.normal(k4, (B, 3, 16, 16), jnp.float32),
        jax.random.normal(k5, (B, 2, 17, 17), jnp.float32),
        jax.random.normal(k6, (B, 1, 32, 32), jnp.float32),
    ]
    n_fields = 3 + 2 + 1
    lambdas = jnp.ones((n_fields,), jnp.float32)

    # ---- step 1: fresh module state (NaN buffer, index -1), like __init__ ----
    buffer = jnp.full((n_fields, BUFFER_LEN), jnp.nan, jnp.float32)
    total, flat, buffer, buffer_index, eps = multi_head_loss_autotune_variance(
        head_fields, head_targets, lambdas, buffer, -1,
        max_tile_lanes=128)   # small tiles to exercise the pipelined reduction
    jax.block_until_ready((total, flat, eps))

    ref_total, ref_flat, _, _, ref_eps = _reference(
        head_fields, head_targets, lambdas,
        jnp.full((n_fields, BUFFER_LEN), jnp.nan, jnp.float32), -1)
    assert jnp.allclose(flat, ref_flat, rtol=1e-5, atol=1e-6), (flat, ref_flat)
    assert jnp.allclose(eps, ref_eps, rtol=1e-5, atol=1e-6), (eps, ref_eps)
    assert jnp.allclose(total, ref_total, rtol=1e-5, atol=1e-6), (total, ref_total)

    # ---- step 2: prefilled finite buffer exercises the variance weighting ----
    buffer2 = jax.random.uniform(jax.random.PRNGKey(1),
                                 (n_fields, BUFFER_LEN), jnp.float32,
                                 minval=0.5, maxval=3.0)
    total2, flat2, _, _, eps2 = multi_head_loss_autotune_variance(
        head_fields, head_targets, lambdas, buffer2, 10)   # default tile sizing
    jax.block_until_ready((total2, flat2, eps2))

    ref_total2, ref_flat2, _, _, ref_eps2 = _reference(
        head_fields, head_targets, lambdas, buffer2, 10)
    assert jnp.allclose(flat2, ref_flat2, rtol=1e-5, atol=1e-6)
    assert jnp.allclose(eps2, ref_eps2, rtol=1e-5, atol=1e-6)
    assert jnp.allclose(total2, ref_total2, rtol=1e-5, atol=1e-6)

    print("KERNEL_OK")
</pallas_src>

<mosaic_0001>
module attributes {stable_mosaic.version = 11 : i64} {
  func.func @_rowsumsq_kernel(%arg0: i32, %arg1: i32, %arg2: memref<6x128xf32, #tpu.memory_space<vmem>>, %arg3: memref<6x128xf32, #tpu.memory_space<vmem>>, %arg4: memref<1x6x128xf32, #tpu.memory_space<vmem>>) attributes {dimension_semantics = [#tpu.dimension_semantics<parallel>, #tpu.dimension_semantics<arbitrary>], iteration_bounds = array<i64: 1, 2>, scalar_prefetch = 0 : i64, scratch_operands = 0 : i64, tpu.core_type = #tpu.core_type<tc>, window_params = [{transform_indices = @transform_0, window_bounds = array<i64: 6, 128>}, {transform_indices = @transform_1, window_bounds = array<i64: 6, 128>}, {transform_indices = @transform_2, window_bounds = array<i64: 1, 6, 128>}]} {
    %c0_i32 = arith.constant 0 : i32
    %0 = arith.cmpi eq, %arg1, %c0_i32 : i32
    %1 = arith.extui %0 : i1 to i32
    %c0_i32_0 = arith.constant 0 : i32
    %2 = arith.cmpi ne, %1, %c0_i32_0 : i32
    scf.if %2 {
      %cst = arith.constant 0.000000e+00 : f32
      %13 = vector.broadcast %cst : f32 to vector<1x6x128xf32>
      %c0_10 = arith.constant 0 : index
      %c0_11 = arith.constant 0 : index
      %c0_12 = arith.constant 0 : index
      %14 = vector.load %arg4[%c0_10, %c0_11, %c0_12] : memref<1x6x128xf32, #tpu.memory_space<vmem>>, vector<1x6x128xf32>
      tpu.vector_store %arg4[%c0_10, %c0_11, %c0_12], %13 {strides = array<i32>} : memref<1x6x128xf32, #tpu.memory_space<vmem>>, vector<1x6x128xf32>,
    } else {
    }
    %c0 = arith.constant 0 : index
    %c0_1 = arith.constant 0 : index
    %3 = vector.load %arg2[%c0, %c0_1] : memref<6x128xf32, #tpu.memory_space<vmem>>, vector<6x128xf32>
    %c0_2 = arith.constant 0 : index
    %c0_3 = arith.constant 0 : index
    %4 = vector.load %arg3[%c0_2, %c0_3] : memref<6x128xf32, #tpu.memory_space<vmem>>, vector<6x128xf32>
    %5 = arith.subf %3, %4 : vector<6x128xf32>
    %6 = arith.mulf %5, %5 : vector<6x128xf32>
    %c0_4 = arith.constant 0 : index
    %c0_5 = arith.constant 0 : index
    %c0_6 = arith.constant 0 : index
    %7 = vector.load %arg4[%c0_4, %c0_5, %c0_6] : memref<1x6x128xf32, #tpu.memory_space<vmem>>, vector<1x6x128xf32>
    %8 = vector.shape_cast %7 : vector<1x6x128xf32> to vector<6x128xf32>
    %9 = arith.addf %8, %6 : vector<6x128xf32>
    %c0_7 = arith.constant 0 : index
    %c0_8 = arith.constant 0 : index
    %c0_9 = arith.constant 0 : index
    %10 = vector.load %arg4[%c0_7, %c0_8, %c0_9] : memref<1x6x128xf32, #tpu.memory_space<vmem>>, vector<1x6x128xf32>
    %11 = vector.shape_cast %10 : vector<1x6x128xf32> to vector<6x128xf32>
    %12 = vector.shape_cast %9 : vector<6x128xf32> to vector<1x6x128xf32>
    tpu.vector_store %arg4[%c0_7, %c0_8, %c0_9], %12 {strides = array<i32>} : memref<1x6x128xf32, #tpu.memory_space<vmem>>, vector<1x6x128xf32>,
    return
  }
  func.func @transform_0(%arg0: i32, %arg1: i32) -> (i32, i32) {
    %c2_i32 = arith.constant 2 : i32
    %0 = arith.muli %arg0, %c2_i32 : i32
    %1 = arith.addi %0, %arg1 : i32
    %c0_i32 = arith.constant 0 : i32
    %c0_i32_0 = arith.constant 0 : i32
    return %c0_i32, %1 : i32, i32
  }
  func.func @transform_1(%arg0: i32, %arg1: i32) -> (i32, i32) {
    %c2_i32 = arith.constant 2 : i32
    %0 = arith.muli %arg0, %c2_i32 : i32
    %1 = arith.addi %0, %arg1 : i32
    %c0_i32 = arith.constant 0 : i32
    %c0_i32_0 = arith.constant 0 : i32
    return %c0_i32, %1 : i32, i32
  }
  func.func @transform_2(%arg0: i32, %arg1: i32) -> (i32, i32, i32) {
    %c0_i32 = arith.constant 0 : i32
    %c0_i32_0 = arith.constant 0 : i32
    %c0_i32_1 = arith.constant 0 : i32
    return %arg0, %c0_i32, %c0_i32_0 : i32, i32, i32
  }
}

</mosaic_0001>

<llo_original>
// kernel: tpu_custom_call.1
$region0: #{tpu_custom_call.1}
  #allocation0 [shape = 'u32[]', space=smem, size = 0x4, offset = 0x4, fixed_abs, tag = 'smem constant byte address 0x4 - core index']
  #allocation1 [shape = 'u32[72,128]{1,0:T(1,128)}', space=vmem, size = 0x9000, scoped, tag = 'internal scratch']
  %s0 = inlined_call_operand.hbm [shape: f32[6,256], index: 0, kind: input, shape index: {}]
  %s1 = inlined_call_operand.hbm [shape: f32[6,256], index: 1, kind: input, shape index: {}]
  %s2 = inlined_call_operand.vmem [shape: f32[1,6,128], index: 2, kind: output, shape index: {}]
  %s3 = sld [smem:[#allocation0]]
  $region53: #{tpu_custom_call.1} parent=0
    _
  %s5 = ssub.s32 1, %s3
  %s6 = scalar_select 0, %s5, %s3
  $region1: #{tpu_custom_call.1} parent=0
    #allocation2 [shape = 'u8[8192]{0}', space=vmem, size = 0x2000, scoped, tag = 'input window, operand 0']
    #allocation3 [shape = 's32[2]{0}', space=sflag, size = 0x8, scoped, tag = 'scoped memory for tpu_custom_call.1']
    #allocation4 [shape = 'u8[8192]{0}', space=vmem, size = 0x2000, scoped, tag = 'input window, operand 1']
    #allocation5 [shape = 's32[2]{0}', space=sflag, size = 0x8, scoped, tag = 'scoped memory for tpu_custom_call.1']
    %7 = vsyncpa [#allocation3], 0
    %s8 = scalar_lea.sflag [#allocation3], 1
    %9 = vsyncpa %s8, 0
    %10 = vsyncpa [#allocation5], 0
    %s11 = scalar_lea.sflag [#allocation5], 1
    %12 = vsyncpa %s11, 0
    loop: start=0, step=1, limit=4
    $region2: #{tpu_custom_call.1} parent=1 // loop_pre_header
      _
    $region3: #{tpu_custom_call.1} parent=1 // loop_header
      %s14 = sphi 0, %s18
      %p15 = scmp.ge.s32.totalorder %s14, 4
      %s21 = sphi 0, %s33
      %s22 = sphi 0, %s29
      %s23 = sphi 0, %s21
      %s24 = sphi 0, %s22
      %s25 = sphi 0, %s23
      %s26 = sphi 0, %s24
      %s40 = sphi 0, %s42
      %s43 = sphi 0, %s40
      %s44 = sphi 0, %s43
      %s60 = sphi 0, %s44
      %s70 = sphi 0, %s72
      %s73 = sphi 0, %s70
      %s74 = sphi 0, %s73
      %s90 = sphi 0, %s74
      %s96 = sphi 0, %s98
      %s99 = sphi 0, %s96
      %s100 = sphi 0, %s99
      %s116 = sphi 0, %s100
    $region4: #{tpu_custom_call.1} parent=1 // loop_header_branch
      %17 = sbr.rel (%p15) target = $region8
    $region5: #{tpu_custom_call.1} parent=1 // loop_body
      %s19 = ssub.s32 %s14, 1
      %s20 = ssub.s32 %s14, 2
      %s27 = sadd.s32 1, %s22
      %p28 = scmp.ge.s32.totalorder %s27, 2
      %s29 = scalar_select %p28, 0, %s27
      %s30 = sadd.s32 1, %s21
      %s31 = scalar_select %p28, %s30, %s21
      %p32 = scmp.ge.s32.totalorder %s31, 1
      %s33 = scalar_select %p32, 0, %s31
      %s34 = smul.u32 %s21, 2
      %s35 = sadd.s32 %s34, %s22
      %s36 = smul.u32 %s33, 2
      %s37 = sadd.s32 %s36, %s29
      %s38 = ssub.s32 %s35, %s37
      %p39 = scmp.eq.s32.totalorder %s38, 0
      %s41 = sadd.s32 %s40, 1
      %s42 = scalar_select %p39, %s40, %s41
      %p45 = pneg %p39
      %p46 = scmp.eq.s32.totalorder %s14, 1
      %p47 = por %p45, %p46
      %p48 = scmp.ne.s32.totalorder %s40, %s43
      %p49 = scmp.eq.s32.totalorder %s14, 0
      %p50 = por %p48, %p49
      %p51 = scmp.ne.s32.totalorder %s40, %s43
      %p52 = scmp.eq.s32.totalorder %s19, 1
      %p53 = por %p51, %p52
      %p54 = scmp.ne.s32.totalorder %s43, %s44
      %p55 = scmp.eq.s32.totalorder %s19, 0
      %p56 = por %p54, %p55
      %p57 = scmp.ne.s32.totalorder %s43, %s44
      %p58 = scmp.eq.s32.totalorder %s20, 1
      %p59 = por %p57, %p58
      %p61 = scmp.ne.s32.totalorder %s44, %s60
      %p62 = scmp.eq.s32.totalorder %s20, 0
      %p63 = por %p61, %p62
      %s64 = smul.u32 %s21, 2
      %s65 = sadd.s32 %s64, %s22
      %s66 = smul.u32 %s33, 2
      %s67 = sadd.s32 %s66, %s29
      %s68 = ssub.s32 %s65, %s67
      %p69 = scmp.eq.s32.totalorder %s68, 0
      %s71 = sadd.s32 %s70, 1
      %s72 = scalar_select %p69, %s70, %s71
      %p75 = pneg %p69
      %p76 = scmp.eq.s32.totalorder %s14, 1
      %p77 = por %p75, %p76
      %p78 = scmp.ne.s32.totalorder %s70, %s73
      %p79 = scmp.eq.s32.totalorder %s14, 0
      %p80 = por %p78, %p79
      %p81 = scmp.ne.s32.totalorder %s70, %s73
      %p82 = scmp.eq.s32.totalorder %s19, 1
      %p83 = por %p81, %p82
      %p84 = scmp.ne.s32.totalorder %s73, %s74
      %p85 = scmp.eq.s32.totalorder %s19, 0
      %p86 = por %p84, %p85
      %p87 = scmp.ne.s32.totalorder %s73, %s74
      %p88 = scmp.eq.s32.totalorder %s20, 1
      %p89 = por %p87, %p88
      %p91 = scmp.ne.s32.totalorder %s74, %s90
      %p92 = scmp.eq.s32.totalorder %s20, 0
      %p93 = por %p91, %p92
      %s94 = ssub.s32 %s21, %s33
      %p95 = scmp.eq.s32.totalorder %s94, 0
      %s97 = sadd.s32 %s96, 1
      %s98 = scalar_select %p95, %s96, %s97
      %p101 = pneg %p95
      %p102 = scmp.eq.s32.totalorder %s14, 1
      %p103 = por %p101, %p102
      %p104 = scmp.ne.s32.totalorder %s96, %s99
      %p105 = scmp.eq.s32.totalorder %s14, 0
      %p106 = por %p104, %p105
      %p107 = scmp.ne.s32.totalorder %s96, %s99
      %p108 = scmp.eq.s32.totalorder %s19, 1
      %p109 = por %p107, %p108
      %p110 = scmp.ne.s32.totalorder %s99, %s100
      %p111 = scmp.eq.s32.totalorder %s19, 0
      %p112 = por %p110, %p111
      %p113 = scmp.ne.s32.totalorder %s99, %s100
      %p114 = scmp.eq.s32.totalorder %s20, 1
      %p115 = por %p113, %p114
      %p117 = scmp.ne.s32.totalorder %s100, %s116
      %p118 = scmp.eq.s32.totalorder %s20, 0
      %p119 = por %p117, %p118
      %p120 = scmp.le.s32.totalorder 1, %s14
      %p121 = scmp.lt.s32.totalorder %s14, 3
      %p122 = pnand %p120, %p121
      %p123 = pneg %p122
      // Predicated region
      $region9: #{tpu_custom_call.1} parent=5 // pred_check
        _
      $region10: #{tpu_custom_call.1} parent=5 // pred_check_branch
        %125 = sbr.rel (%p122) target = $region12
      $region11: #{tpu_custom_call.1} parent=5 // pred_region
        %s126 = ssub.s32 %s14, 1
      $region12: #{tpu_custom_call.1} parent=5 // pred_fallthru
        _
      %p127 = scmp.lt.s32.totalorder %s14, 2
      // Predicated region
      $region13: #{tpu_custom_call.1} parent=5 // pred_check
        %p128 = pneg %p127
      $region14: #{tpu_custom_call.1} parent=5 // pred_check_branch
        %130 = sbr.rel (%p128) target = $region16
      $region15: #{tpu_custom_call.1} parent=5 // pred_region
        // Predicated region
        $region17: #{tpu_custom_call.1} parent=15 // pred_check
          %p131 = pneg %p50
        $region18: #{tpu_custom_call.1} parent=15 // pred_check_branch
          %133 = sbr.rel (%p131) target = $region20
        $region19: #{tpu_custom_call.1} parent=15 // pred_region
          %s134 = sand.u32 %s40, 1
          %s135 = scalar_lea.sflag [#allocation3], %s134
          %s136 = sand.u32 %s40, 1
          %s137 = smul.addr %s136, 8
          %s138 = scalar_lea.vmem [#allocation2], %s137
          %s139 = smul.u32 %s21, 2
          %s140 = sadd.s32 %s139, %s22
          %142 = vsyncadd %s135, 0
          %s143 = smul.addr %s140, 8
          %s144 = scalar_lea.hbm %s0, %s143
          %s146 = sshll.u32 %s144, 4
          %s147 = int_to_ptr.hbm [resolvable:$true] %s146
          %s148 = sshll.u32 %s138, 4
          %s149 = int_to_ptr.vmem [resolvable:$true] %s148
          %151 = dma.hbm_to_vmem [thread:$0]  %s147, 128, %s149, %s135
        $region20: #{tpu_custom_call.1} parent=15 // pred_fallthru
          _
        // Predicated region
        $region21: #{tpu_custom_call.1} parent=15 // pred_check
          %p152 = pneg %p80
        $region22: #{tpu_custom_call.1} parent=15 // pred_check_branch
          %154 = sbr.rel (%p152) target = $region24
        $region23: #{tpu_custom_call.1} parent=15 // pred_region
          %s155 = sand.u32 %s70, 1
          %s156 = scalar_lea.sflag [#allocation5], %s155
          %s157 = sand.u32 %s70, 1
          %s158 = smul.addr %s157, 8
          %s159 = scalar_lea.vmem [#allocation4], %s158
          %s160 = smul.u32 %s21, 2
          %s161 = sadd.s32 %s160, %s22
          %163 = vsyncadd %s156, 0
          %s164 = smul.addr %s161, 8
          %s165 = scalar_lea.hbm %s1, %s164
          %s167 = sshll.u32 %s165, 4
          %s168 = int_to_ptr.hbm [resolvable:$true] %s167
          %s169 = sshll.u32 %s159, 4
          %s170 = int_to_ptr.vmem [resolvable:$true] %s169
          %172 = dma.hbm_to_vmem [thread:$0]  %s168, 128, %s170, %s156
        $region24: #{tpu_custom_call.1} parent=15 // pred_fallthru
          _
      $region16: #{tpu_custom_call.1} parent=5 // pred_fallthru
        _
      %p173 = scmp.le.s32.totalorder 1, %s14
      %p174 = scmp.lt.s32.totalorder %s14, 3
      %p175 = pnand %p173, %p174
      %p176 = pneg %p175
      // Predicated region
      $region25: #{tpu_custom_call.1} parent=5 // pred_check
        _
      $region26: #{tpu_custom_call.1} parent=5 // pred_check_branch
        %178 = sbr.rel (%p175) target = $region28
      $region27: #{tpu_custom_call.1} parent=5 // pred_region
        %s179 = ssub.s32 %s14, 1
        %s180 = sand.u32 %s43, 1
        %s181 = scalar_lea.sflag [#allocation3], %s180
        %s182 = sand.u32 %s43, 1
        %s183 = smul.addr %s182, 8
        %s184 = scalar_lea.vmem [#allocation2], %s183
        // Predicated region
        $region29: #{tpu_custom_call.1} parent=27 // pred_check
          %p185 = pneg %p56
        $region30: #{tpu_custom_call.1} parent=27 // pred_check_branch
          %187 = sbr.rel (%p185) target = $region32
        $region31: #{tpu_custom_call.1} parent=27 // pred_region
          %189 = dma.done %s181, 128
        $region32: #{tpu_custom_call.1} parent=27 // pred_fallthru
          _
        %s190 = sand.u32 %s73, 1
        %s191 = scalar_lea.sflag [#allocation5], %s190
        %s192 = sand.u32 %s73, 1
        %s193 = smul.addr %s192, 8
        %s194 = scalar_lea.vmem [#allocation4], %s193
        // Predicated region
        $region33: #{tpu_custom_call.1} parent=27 // pred_check
          %p195 = pneg %p86
        $region34: #{tpu_custom_call.1} parent=27 // pred_check_branch
          %197 = sbr.rel (%p195) target = $region36
        $region35: #{tpu_custom_call.1} parent=27 // pred_region
          %199 = dma.done %s191, 128
        $region36: #{tpu_custom_call.1} parent=27 // pred_fallthru
          _
        %s200 = sand.u32 %s43, 1
        %s201 = scalar_lea.sflag [#allocation3], %s200
        %s202 = sand.u32 %s43, 1
        %s203 = smul.addr %s202, 8
        %s204 = scalar_lea.vmem [#allocation2], %s203
        %p205 = pneg %p56
        %p206 = pneg %p53
        %s207 = sand.u32 %s73, 1
        %s208 = scalar_lea.sflag [#allocation5], %s207
        %s209 = sand.u32 %s73, 1
        %s210 = smul.addr %s209, 8
        %s211 = scalar_lea.vmem [#allocation4], %s210
        %p212 = pneg %p86
        %p213 = pneg %p83
        %p214 = pneg %p112
        %p215 = pneg %p109
        %p216 = scmp.lt.s32.totalorder %s23, 0
        %s217 = scalar_select %p216, %s23, 0
        %s218 = smul.addr %s217, 8
        %s219 = scalar_lea.vmem %s2, %s218
        %s220 = smul.u32 %s23, 2
        %s221 = sadd.s32 %s220, %s24
        %s222 = smul.u32 %s23, 2
        %s223 = sadd.s32 %s222, %s24
        %p224 = scmp.lt.s32.totalorder %s23, 0
        %s225 = scalar_select %p224, %s23, 0
        %s226 = smul.addr %s225, 8
        %s227 = scalar_lea.vmem %s2, %s226
        %p228 = scmp.eq.s32.totalorder %s24, 0
        // Predicated region
        $region37: #{tpu_custom_call.1} parent=27 // pred_check
          %p229 = pneg %p228
        $region38: #{tpu_custom_call.1} parent=27 // pred_check_branch
          %231 = sbr.rel (%p229) target = $region40
        $region39: #{tpu_custom_call.1} parent=27 // pred_region
          %232 = vst [vmem:[%s227] sm:$0x3f] 0.0
        $region40: #{tpu_custom_call.1} parent=27 // pred_fallthru
          _
        %v233 = vld [vmem:[%s184] sm:$0x3f]
        %v234 = vld [vmem:[%s194] sm:$0x3f]
        %v235 = vsub.f32 %v233, %v234
        %v236 = vmul.f32 %v235, %v235
        %v237 = vld [vmem:[%s227] sm:$0x3f]
        %v238 = vadd.f32 %v237, %v236
        %239 = vst [vmem:[%s227] sm:$0x3f] %v238
        %p240 = scmp.lt.s32.totalorder %s23, 0
        %s241 = scalar_select %p240, %s23, 0
        %s242 = smul.addr %s241, 8
        %s243 = scalar_lea.vmem %s2, %s242
        // Predicated region
        $region41: #{tpu_custom_call.1} parent=27 // pred_check
          %p244 = pneg %p109
        $region42: #{tpu_custom_call.1} parent=27 // pred_check_branch
          %246 = sbr.rel (%p244) target = $region44
        $region43: #{tpu_custom_call.1} parent=27 // pred_region
          _
        $region44: #{tpu_custom_call.1} parent=27 // pred_fallthru
          _
        // Predicated region
        $region45: #{tpu_custom_call.1} parent=27 // pred_check
          %p247 = pneg %p109
        $region46: #{tpu_custom_call.1} parent=27 // pred_check_branch
          %249 = sbr.rel (%p247) target = $region48
        $region47: #{tpu_custom_call.1} parent=27 // pred_region
          %p250 = scmp.lt.s32.totalorder %s23, 0
          %s251 = scalar_select %p250, %s23, 0
          %s252 = smul.addr %s251, 8
          %s253 = scalar_lea.vmem %s2, %s252
        $region48: #{tpu_custom_call.1} parent=27 // pred_fallthru
          _
      $region28: #{tpu_custom_call.1} parent=5 // pred_fallthru
        _
      %p254 = scmp.le.s32.totalorder 2, %s14
      // Predicated region
      $region49: #{tpu_custom_call.1} parent=5 // pred_check
        %p255 = pneg %p254
      $region50: #{tpu_custom_call.1} parent=5 // pred_check_branch
        %257 = sbr.rel (%p255) target = $region52
      $region51: #{tpu_custom_call.1} parent=5 // pred_region
        %s258 = ssub.s32 %s14, 2
      $region52: #{tpu_custom_call.1} parent=5 // pred_fallthru
        _
    $region6: #{tpu_custom_call.1} parent=1 // loop_footer
      %s18 = sadd.s32 1, %s14
    $region7: #{tpu_custom_call.1} parent=1 // loop_footer_branch
      %13 = sbr.rel target = $region3
    $region8: #{tpu_custom_call.1} parent=1 // loop_exit
      _
    %259 = vsyncpa [#allocation3], 1
    %s260 = scalar_lea.sflag [#allocation3], 1
    %261 = vsyncpa %s260, 1
    %262 = vsyncpa [#allocation5], 1
    %s263 = scalar_lea.sflag [#allocation5], 1
    %264 = vsyncpa %s263, 1

</llo_original>
